<compile_context>
chip_gen: v6e
topology: v6e:2x2x1
jax: 0.10.0
libtpu: 0.0.40
codegen_flags: <defaults>
</compile_context>

<pallas_src>
import jax
import jax.numpy as jnp
from jax import lax
from jax.experimental import pallas as pl
from jax.experimental.pallas import tpu as pltpu


def _round_up(x, m):
    return ((x + m - 1) // m) * m


def _padded_tile_bytes(shape, itemsize):
    """VMEM footprint of a 2-D block: rows pad to 8 sublanes, cols to 128 lanes."""
    r, c = shape
    return _round_up(r, 8) * _round_up(c, 128) * itemsize


def _mlp_kernel(x_ref, w1_ref, b1_ref, w2_ref, b2_ref, w3_ref, b3_ref, o_ref):
    x = x_ref[...]                                        # (TILE_B, n_in)
    w1 = w1_ref[...]

    # Layer 1: W1 @ x.T  (A @ B.T pattern -> batch on the lane axis).
    h1 = lax.dot_general(
        w1, x.astype(w1.dtype), (((1,), (1,)), ((), ())),
        preferred_element_type=jnp.float32)               # (32, TILE_B) f32
    h1 = jnp.maximum(h1 + b1_ref[...], 0.0)               # ReLU; dropout1 = identity (eval)

    # Layer 2: W2 @ h1 (operands cast to weight dtype, f32 accumulation).
    w2 = w2_ref[...]
    h2 = jnp.dot(w2, h1.astype(w2.dtype),
                 preferred_element_type=jnp.float32)      # (16, TILE_B) f32
    h2 = jnp.maximum(h2 + b2_ref[...], 0.0)               # ReLU; dropout2 = identity (eval)

    # Layer 3: W3 @ h2 -> lane-dense (1, TILE_B) output row.
    w3 = w3_ref[...]
    out = jnp.dot(w3, h2.astype(w3.dtype),
                  preferred_element_type=jnp.float32)     # (1, TILE_B) f32
    out = jnp.maximum(out + b3_ref[...], 0.0)             # final ReLU

    o_ref[...] = out.astype(o_ref.dtype)


def network_forward(x, params, *, tile_b=None, target_tile_bytes=4 << 20):
    """x: (batch, n_in). params: PyTorch-layout weights (out,in) and biases (out,1)."""
    dtype = x.dtype
    # Weights follow x's dtype (cheap, keeps MXU operands homogeneous).
    w1 = params["w1"].astype(dtype)
    w2 = params["w2"].astype(dtype)
    w3 = params["w3"].astype(dtype)
    # Biases stay f32: they are added to the f32 accumulators.
    b1 = params["b1"].astype(jnp.float32)
    b2 = params["b2"].astype(jnp.float32)
    b3 = params["b3"].astype(jnp.float32)

    batch, n_in = x.shape
    h1d, h2d, n_out = w1.shape[0], w2.shape[0], w3.shape[0]
    itemsize = dtype.itemsize

    # --- Tile sizing by bytes (lane-padded), not rows. ---
    row_bytes = _round_up(n_in, 128) * itemsize            # real VMEM bytes / batch row
    if tile_b is None:
        tile_b = max(128, (target_tile_bytes // row_bytes) // 128 * 128)
    else:
        tile_b = max(128, _round_up(int(tile_b), 128))

    batch_blocks = _round_up(batch, 128)
    tile_b = min(tile_b, batch_blocks)
    # Keep >=2 grid steps when the batch allows it (v7x has 2 TensorCores).
    if batch_blocks >= 256:
        tile_b = min(tile_b, max(128, _round_up(batch_blocks // 2, 128)))

    grid = (pl.cdiv(batch, tile_b),)                       # ragged tail handled by Pallas

    # --- Explicit VMEM budget (double-buffered, lane-padded) for all gens. ---
    x_buf = 2 * _padded_tile_bytes((tile_b, n_in), itemsize)
    o_buf = 2 * _padded_tile_bytes((n_out, tile_b), 4)
    p_buf = sum(_padded_tile_bytes(a.shape, a.dtype.itemsize)
                for a in (w1, b1, w2, b2, w3, b3))
    tmp_buf = tile_b * (h1d + h2d) * 4                     # f32 h1/h2 temporaries
    vmem_limit = int(1.5 * (x_buf + o_buf + p_buf + tmp_buf)) + (4 << 20)
    vmem_limit = min(max(vmem_limit, 16 << 20), 40 << 20)  # safe on v7x's 64 MiB VMEM

    flops = 2 * batch * (n_in * h1d + h1d * h2d + h2d * n_out)
    param_bytes = sum(int(a.size) * a.dtype.itemsize
                      for a in (w1, b1, w2, b2, w3, b3))
    bytes_accessed = int(batch) * n_in * itemsize + int(batch) * n_out * 4 + param_bytes

    const_spec = lambda shape: pl.BlockSpec(shape, lambda i: (0, 0))

    out_t = pl.pallas_call(
        _mlp_kernel,
        out_shape=jax.ShapeDtypeStruct((n_out, batch), jnp.float32),
        grid=grid,
        in_specs=[
            pl.BlockSpec((tile_b, n_in), lambda i: (i, 0)),  # x: tiled over batch
            const_spec(w1.shape), const_spec(b1.shape),      # params: VMEM-resident
            const_spec(w2.shape), const_spec(b2.shape),
            const_spec(w3.shape), const_spec(b3.shape),
        ],
        out_specs=pl.BlockSpec((n_out, tile_b), lambda i: (0, i)),
        compiler_params=pltpu.CompilerParams(
            dimension_semantics=("parallel",),
            vmem_limit_bytes=vmem_limit),
        cost_estimate=pl.CostEstimate(flops=flops, transcendentals=0,
                                      bytes_accessed=bytes_accessed),
    )(x, w1, b1, w2, b2, w3, b3)

    # (n_out, batch) -> (batch, n_out); layout plumbing only (tiny array).
    return out_t.T


def init_params(key, n_in, n_hid1=32, n_hid2=16, n_out=1):
    """PyTorch nn.Linear default init: U[-1/sqrt(fan_in), +1/sqrt(fan_in)]."""
    ks = jax.random.split(key, 6)

    def lin(kw, kb, fan_in, fan_out):
        bound = 1.0 / float(fan_in) ** 0.5
        w = jax.random.uniform(kw, (fan_out, fan_in), jnp.float32, -bound, bound)
        b = jax.random.uniform(kb, (fan_out, 1), jnp.float32, -bound, bound)
        return w, b

    w1, b1 = lin(ks[0], ks[1], n_in, n_hid1)
    w2, b2 = lin(ks[2], ks[3], n_hid1, n_hid2)
    w3, b3 = lin(ks[4], ks[5], n_hid2, n_out)
    return {"w1": w1, "b1": b1, "w2": w2, "b2": b2, "w3": w3, "b3": b3}


def _reference_forward(x, p):
    h1 = jnp.maximum(x @ p["w1"].T + p["b1"].T, 0.0)
    h2 = jnp.maximum(h1 @ p["w2"].T + p["b2"].T, 0.0)
    return jnp.maximum(h2 @ p["w3"].T + p["b3"].T, 0.0)


if __name__ == "__main__":
    key = jax.random.PRNGKey(0)
    k_x, k_p, k_x2 = jax.random.split(key, 3)

    batch, n_in = 8, 16
    x = jax.random.normal(k_x, (batch, n_in), jnp.float32)
    params = init_params(k_p, n_in, n_hid1=32, n_hid2=16, n_out=1)

    # f32 path, single grid step, batch (8) smaller than the 128-row block.
    out = jax.block_until_ready(network_forward(x, params))
    ref = _reference_forward(x, params)
    assert out.shape == (batch, 1)
    assert jnp.allclose(out, ref, atol=2e-5, rtol=2e-5)

    # Ragged-batch path: no wrapper pad, cdiv grid, masked final block (3 steps).
    x2 = jax.random.normal(k_x2, (300, n_in), jnp.float32)
    out2 = jax.block_until_ready(network_forward(x2, params, tile_b=128))
    ref2 = _reference_forward(x2, params)
    assert out2.shape == (300, 1)
    assert jnp.all(jnp.isfinite(out2))
    assert jnp.allclose(out2, ref2, atol=2e-5, rtol=2e-5)

    # bf16-fed path (halves the dominant HBM read of x); f32 accumulation kept.
    xb = x2.astype(jnp.bfloat16)
    pb = {k: v.astype(jnp.bfloat16) for k, v in params.items()}
    out3 = jax.block_until_ready(network_forward(xb, pb))
    ref3 = _reference_forward(xb.astype(jnp.float32),
                              {k: v.astype(jnp.float32) for k, v in pb.items()})
    assert out3.shape == (300, 1)
    assert jnp.allclose(out3, ref3, atol=1e-1, rtol=1e-1)

    print("KERNEL_OK")
</pallas_src>

<mosaic_0001>
module attributes {stable_mosaic.version = 11 : i64} {
  func.func @_mlp_kernel(%arg0: i32, %arg1: memref<128x16xf32, #tpu.memory_space<vmem>>, %arg2: memref<32x16xf32, #tpu.memory_space<vmem>>, %arg3: memref<32x1xf32, #tpu.memory_space<vmem>>, %arg4: memref<16x32xf32, #tpu.memory_space<vmem>>, %arg5: memref<16x1xf32, #tpu.memory_space<vmem>>, %arg6: memref<1x16xf32, #tpu.memory_space<vmem>>, %arg7: memref<1x1xf32, #tpu.memory_space<vmem>>, %arg8: memref<1x128xf32, #tpu.memory_space<vmem>>) attributes {dimension_semantics = [#tpu.dimension_semantics<parallel>], iteration_bounds = array<i64: 1>, scalar_prefetch = 0 : i64, scratch_operands = 0 : i64, tpu.core_type = #tpu.core_type<tc>, window_params = [{transform_indices = @transform_0, window_bounds = array<i64: 128, 16>}, {pipeline_mode = #tpu.pipeline_mode<synchronous>, transform_indices = @transform_1, window_bounds = array<i64: 32, 16>}, {pipeline_mode = #tpu.pipeline_mode<synchronous>, transform_indices = @transform_2, window_bounds = array<i64: 32, 1>}, {pipeline_mode = #tpu.pipeline_mode<synchronous>, transform_indices = @transform_3, window_bounds = array<i64: 16, 32>}, {pipeline_mode = #tpu.pipeline_mode<synchronous>, transform_indices = @transform_4, window_bounds = array<i64: 16, 1>}, {pipeline_mode = #tpu.pipeline_mode<synchronous>, transform_indices = @transform_5, window_bounds = array<i64: 1, 16>}, {pipeline_mode = #tpu.pipeline_mode<synchronous>, transform_indices = @transform_6, window_bounds = array<i64: 1, 1>}, {transform_indices = @transform_7, window_bounds = array<i64: 1, 128>}]} {
    %c0 = arith.constant 0 : index
    %c0_0 = arith.constant 0 : index
    %0 = vector.load %arg1[%c0, %c0_0] : memref<128x16xf32, #tpu.memory_space<vmem>>, vector<128x16xf32>
    %c0_1 = arith.constant 0 : index
    %c0_2 = arith.constant 0 : index
    %1 = vector.load %arg2[%c0_1, %c0_2] : memref<32x16xf32, #tpu.memory_space<vmem>>, vector<32x16xf32>
    %cst = arith.constant dense<0.000000e+00> : vector<32x128xf32>
    %2 = tpu.matmul %1, %0, %cst {dimension_numbers = #tpu.dot_dimension_numbers<[1], [1], [0], [0], [0, 0, 1, 0], [], []>} : vector<32x16xf32>, vector<128x16xf32>, vector<32x128xf32> -> vector<32x128xf32>
    %c0_3 = arith.constant 0 : index
    %c0_4 = arith.constant 0 : index
    %3 = vector.load %arg3[%c0_3, %c0_4] : memref<32x1xf32, #tpu.memory_space<vmem>>, vector<32x1xf32>
    %4 = vector.broadcast %3 : vector<32x1xf32> to vector<32x128xf32>
    %5 = arith.addf %2, %4 : vector<32x128xf32>
    %cst_5 = arith.constant 0.000000e+00 : f32
    %6 = vector.broadcast %cst_5 : f32 to vector<32x128xf32>
    %7 = arith.maximumf %5, %6 : vector<32x128xf32>
    %c0_6 = arith.constant 0 : index
    %c0_7 = arith.constant 0 : index
    %8 = vector.load %arg4[%c0_6, %c0_7] : memref<16x32xf32, #tpu.memory_space<vmem>>, vector<16x32xf32>
    %cst_8 = arith.constant dense<0.000000e+00> : vector<16x128xf32>
    %9 = tpu.matmul %8, %7, %cst_8 {dimension_numbers = #tpu.dot_dimension_numbers<[1], [0], [0], [1], [0, 0, 1, 1], [], []>} : vector<16x32xf32>, vector<32x128xf32>, vector<16x128xf32> -> vector<16x128xf32>
    %c0_9 = arith.constant 0 : index
    %c0_10 = arith.constant 0 : index
    %10 = vector.load %arg5[%c0_9, %c0_10] : memref<16x1xf32, #tpu.memory_space<vmem>>, vector<16x1xf32>
    %11 = vector.broadcast %10 : vector<16x1xf32> to vector<16x128xf32>
    %12 = arith.addf %9, %11 : vector<16x128xf32>
    %cst_11 = arith.constant 0.000000e+00 : f32
    %13 = vector.broadcast %cst_11 : f32 to vector<16x128xf32>
    %14 = arith.maximumf %12, %13 : vector<16x128xf32>
    %c0_12 = arith.constant 0 : index
    %c0_13 = arith.constant 0 : index
    %15 = vector.load %arg6[%c0_12, %c0_13] : memref<1x16xf32, #tpu.memory_space<vmem>>, vector<1x16xf32>
    %cst_14 = arith.constant dense<0.000000e+00> : vector<1x128xf32>
    %16 = tpu.matmul %15, %14, %cst_14 {dimension_numbers = #tpu.dot_dimension_numbers<[1], [0], [0], [1], [0, 0, 1, 1], [], []>} : vector<1x16xf32>, vector<16x128xf32>, vector<1x128xf32> -> vector<1x128xf32>
    %c0_15 = arith.constant 0 : index
    %c0_16 = arith.constant 0 : index
    %17 = vector.load %arg7[%c0_15, %c0_16] : memref<1x1xf32, #tpu.memory_space<vmem>>, vector<1x1xf32>
    %18 = vector.broadcast %17 : vector<1x1xf32> to vector<1x128xf32>
    %19 = arith.addf %16, %18 : vector<1x128xf32>
    %cst_17 = arith.constant 0.000000e+00 : f32
    %20 = vector.broadcast %cst_17 : f32 to vector<1x128xf32>
    %21 = arith.maximumf %19, %20 : vector<1x128xf32>
    %c0_18 = arith.constant 0 : index
    %c0_19 = arith.constant 0 : index
    %22 = vector.load %arg8[%c0_18, %c0_19] : memref<1x128xf32, #tpu.memory_space<vmem>>, vector<1x128xf32>
    tpu.vector_store %arg8[%c0_18, %c0_19], %21 {strides = array<i32>} : memref<1x128xf32, #tpu.memory_space<vmem>>, vector<1x128xf32>,
    return
  }
  func.func @transform_0(%arg0: i32) -> (i32, i32) {
    %c0_i32 = arith.constant 0 : i32
    %c0_i32_0 = arith.constant 0 : i32
    return %arg0, %c0_i32 : i32, i32
  }
  func.func @transform_1(%arg0: i32) -> (i32, i32) {
    %c0_i32 = arith.constant 0 : i32
    %c0_i32_0 = arith.constant 0 : i32
    %c0_i32_1 = arith.constant 0 : i32
    return %c0_i32, %c0_i32_0 : i32, i32
  }
  func.func @transform_2(%arg0: i32) -> (i32, i32) {
    %c0_i32 = arith.constant 0 : i32
    %c0_i32_0 = arith.constant 0 : i32
    %c0_i32_1 = arith.constant 0 : i32
    return %c0_i32, %c0_i32_0 : i32, i32
  }
  func.func @transform_3(%arg0: i32) -> (i32, i32) {
    %c0_i32 = arith.constant 0 : i32
    %c0_i32_0 = arith.constant 0 : i32
    %c0_i32_1 = arith.constant 0 : i32
    return %c0_i32, %c0_i32_0 : i32, i32
  }
  func.func @transform_4(%arg0: i32) -> (i32, i32) {
    %c0_i32 = arith.constant 0 : i32
    %c0_i32_0 = arith.constant 0 : i32
    %c0_i32_1 = arith.constant 0 : i32
    return %c0_i32, %c0_i32_0 : i32, i32
  }
  func.func @transform_5(%arg0: i32) -> (i32, i32) {
    %c0_i32 = arith.constant 0 : i32
    %c0_i32_0 = arith.constant 0 : i32
    %c0_i32_1 = arith.constant 0 : i32
    return %c0_i32, %c0_i32_0 : i32, i32
  }
  func.func @transform_6(%arg0: i32) -> (i32, i32) {
    %c0_i32 = arith.constant 0 : i32
    %c0_i32_0 = arith.constant 0 : i32
    %c0_i32_1 = arith.constant 0 : i32
    return %c0_i32, %c0_i32_0 : i32, i32
  }
  func.func @transform_7(%arg0: i32) -> (i32, i32) {
    %c0_i32 = arith.constant 0 : i32
    %c0_i32_0 = arith.constant 0 : i32
    return %c0_i32, %arg0 : i32, i32
  }
}

</mosaic_0001>

<llo_original>
// kernel: tpu_custom_call.1
$region0: #{tpu_custom_call.1}
  #allocation0 [shape = 'u32[]', space=smem, size = 0x4, offset = 0x4, fixed_abs, tag = 'smem constant byte address 0x4 - core index']
  #allocation1 [shape = 'u32[144,128]{1,0:T(1,128)}', space=vmem, size = 0x12000, scoped, tag = 'internal scratch']
  #allocation2 [shape = 'f32[1,1]{1,0:T(1,128)S(1)}', space=vmem, size = 0x200, scoped, tag = 'scoped memory for tpu_custom_call.1']
  %s0 = inlined_call_operand.vmem [shape: f32[8,16], index: 0, kind: input, shape index: {}]
  %s1 = inlined_call_operand.vmem [shape: f32[32,16], index: 1, kind: input, shape index: {}]
  %s2 = inlined_call_operand.vmem [shape: f32[32,1], index: 2, kind: input, shape index: {}]
  %s3 = inlined_call_operand.vmem [shape: f32[16,32], index: 3, kind: input, shape index: {}]
  %s4 = inlined_call_operand.vmem [shape: f32[16,1], index: 4, kind: input, shape index: {}]
  %s5 = inlined_call_operand.vmem [shape: f32[1,16], index: 5, kind: input, shape index: {}]
  %s6 = inlined_call_operand.<no memory space> [shape: f32[1,1], index: 6, kind: input, shape index: {}]
  %s7 = inlined_call_operand.hbm [shape: f32[1,8], index: 7, kind: output, shape index: {}]
  %s8 = sld [smem:[#allocation0]]
  $region38: #{tpu_custom_call.1} parent=0
    _
  %s10 = ssub.s32 1, %s8
  %s11 = scalar_select 0, %s10, %s8
  %v12 = vstv %s6
  %13 = vst [vmem:[#allocation2] sm:$0x1] %v12
  $region1: #{tpu_custom_call.1} parent=0
    #allocation3 [shape = 'u8[512]{0}', space=vmem, size = 0x400, scoped, tag = 'output window, operand 0, single buffered']
    #allocation4 [shape = 's32[1]{0}', space=sflag, size = 0x4, scoped, tag = 'scoped memory for tpu_custom_call.1']
    %14 = vsyncpa [#allocation4], 0
    // Predicated region
    $region2: #{tpu_custom_call.1} parent=1 // pred_check
      _
    $region3: #{tpu_custom_call.1} parent=1 // pred_check_branch
      %16 = sbr.rel (0) target = $region5
    $region4: #{tpu_custom_call.1} parent=1 // pred_region
      _
    $region5: #{tpu_custom_call.1} parent=1 // pred_fallthru
      _
    // Predicated region
    $region6: #{tpu_custom_call.1} parent=1 // pred_check
      _
    $region7: #{tpu_custom_call.1} parent=1 // pred_check_branch
      %18 = sbr.rel (0) target = $region9
    $region8: #{tpu_custom_call.1} parent=1 // pred_region
      _
    $region9: #{tpu_custom_call.1} parent=1 // pred_fallthru
      _
    // Predicated region
    $region10: #{tpu_custom_call.1} parent=1 // pred_check
      _
    $region11: #{tpu_custom_call.1} parent=1 // pred_check_branch
      %20 = sbr.rel (0) target = $region13
    $region12: #{tpu_custom_call.1} parent=1 // pred_region
      _
    $region13: #{tpu_custom_call.1} parent=1 // pred_fallthru
      _
    // Predicated region
    $region14: #{tpu_custom_call.1} parent=1 // pred_check
      _
    $region15: #{tpu_custom_call.1} parent=1 // pred_check_branch
      %22 = sbr.rel (0) target = $region17
    $region16: #{tpu_custom_call.1} parent=1 // pred_region
      _
    $region17: #{tpu_custom_call.1} parent=1 // pred_fallthru
      _
    // Predicated region
    $region18: #{tpu_custom_call.1} parent=1 // pred_check
      _
    $region19: #{tpu_custom_call.1} parent=1 // pred_check_branch
      %24 = sbr.rel (0) target = $region21
    $region20: #{tpu_custom_call.1} parent=1 // pred_region
      _
    $region21: #{tpu_custom_call.1} parent=1 // pred_fallthru
      _
    // Predicated region
    $region22: #{tpu_custom_call.1} parent=1 // pred_check
      _
    $region23: #{tpu_custom_call.1} parent=1 // pred_check_branch
      %26 = sbr.rel (0) target = $region25
    $region24: #{tpu_custom_call.1} parent=1 // pred_region
      _
    $region25: #{tpu_custom_call.1} parent=1 // pred_fallthru
      _
    // Predicated region
    $region26: #{tpu_custom_call.1} parent=1 // pred_check
      _
    $region27: #{tpu_custom_call.1} parent=1 // pred_check_branch
      %28 = sbr.rel (0) target = $region29
    $region28: #{tpu_custom_call.1} parent=1 // pred_region
      _
    $region29: #{tpu_custom_call.1} parent=1 // pred_fallthru
      _
    %v29 = vld [vmem:[%s0] sm:$0xff]
    %v30 = vld [vmem:[%s0 + $0x8] sm:$0xff]
    %v31 = vld [vmem:[%s0 + $0x10] sm:$0xff]
    %v32 = vld [vmem:[%s0 + $0x18] sm:$0xff]
    %v33 = vld [vmem:[%s0 + $0x20] sm:$0xff]
    %v34 = vld [vmem:[%s0 + $0x28] sm:$0xff]
    %v35 = vld [vmem:[%s0 + $0x30] sm:$0xff]
    %v36 = vld [vmem:[%s0 + $0x38] sm:$0xff]
    %v37 = vld [vmem:[%s0 + $0x40] sm:$0xff]
    %v38 = vld [vmem:[%s0 + $0x48] sm:$0xff]
    %v39 = vld [vmem:[%s0 + $0x50] sm:$0xff]
    %v40 = vld [vmem:[%s0 + $0x58] sm:$0xff]
    %v41 = vld [vmem:[%s0 + $0x60] sm:$0xff]
    %v42 = vld [vmem:[%s0 + $0x68] sm:$0xff]
    %v43 = vld [vmem:[%s0 + $0x70] sm:$0xff]
    %v44 = vld [vmem:[%s0 + $0x78] sm:$0xff]
    %v45 = vld [vmem:[%s1] sm:$0xff]
    %v46 = vld [vmem:[%s1 + $0x8] sm:$0xff]
    %v47 = vld [vmem:[%s1 + $0x10] sm:$0xff]
    %v48 = vld [vmem:[%s1 + $0x18] sm:$0xff]
    %v49 = vld [vmem:[%s2] sm:$0xff]
    %v50 = vld [vmem:[%s2 + $0x8] sm:$0xff]
    %v51 = vld [vmem:[%s2 + $0x10] sm:$0xff]
    %v52 = vld [vmem:[%s2 + $0x18] sm:$0xff]
    %54 = vset.pattern.permute.xlu0 0
    %55 = vperm.xlu0 %54, %v49
    %v56 = vpop.permute.xlu0 %55
    %59 = vset.pattern.permute.xlu0 0
    %60 = vperm.xlu0 %59, %v50
    %v61 = vpop.permute.xlu0 %60
    %64 = vset.pattern.permute.xlu0 0
    %65 = vperm.xlu0 %64, %v51
    %v66 = vpop.permute.xlu0 %65
    %69 = vset.pattern.permute.xlu0 0
    %70 = vperm.xlu0 %69, %v52
    %v71 = vpop.permute.xlu0 %70
    %vm73 = vcmask 130048
    %v75 = vsel %vm73, %v45, 0
    %v78 = vsel %vm73, %v46, 0
    %v81 = vsel %vm73, %v47, 0
    %v84 = vsel %vm73, %v48, 0
    %v87 = vsel %vm73, %v29, 0
    %v90 = vsel %vm73, %v30, 0
    %v93 = vsel %vm73, %v31, 0
    %v96 = vsel %vm73, %v32, 0
    %v99 = vsel %vm73, %v33, 0
    %v102 = vsel %vm73, %v34, 0
    %v105 = vsel %vm73, %v35, 0
    %v108 = vsel %vm73, %v36, 0
    %v111 = vsel %vm73, %v37, 0
    %v114 = vsel %vm73, %v38, 0
    %v117 = vsel %vm73, %v39, 0
    %v120 = vsel %vm73, %v40, 0
    %v123 = vsel %vm73, %v41, 0
    %v126 = vsel %vm73, %v42, 0
    %v129 = vsel %vm73, %v43, 0
    %v132 = vsel %vm73, %v44, 0
    %134 = vmatprep.subr.mxu0 0.0
    %135 = vmatpush1.xpose.msra.mxu0 %v132
    %136 = vmatprep.subr.mxu0 0.0
    %137 = vmatpush1.xpose.msra.mxu0 %v129
    %138 = vmatprep.subr.mxu0 0.0
    %139 = vmatpush1.xpose.msra.mxu0 %v126
    %140 = vmatprep.subr.mxu0 0.0
    %141 = vmatpush1.xpose.msra.mxu0 %v123
    %142 = vmatprep.subr.mxu0 0.0
    %143 = vmatpush1.xpose.msra.mxu0 %v120
    %144 = vmatprep.subr.mxu0 0.0
    %145 = vmatpush1.xpose.msra.mxu0 %v117
    %146 = vmatprep.subr.mxu0 0.0
    %147 = vmatpush1.xpose.msra.mxu0 %v114
    %148 = vmatprep.subr.mxu0 0.0
    %149 = vmatpush1.xpose.msra.mxu0 %v111
    %150 = vmatprep.subr.mxu0 0.0
    %151 = vmatpush1.xpose.msra.mxu0 %v108
    %152 = vmatprep.subr.mxu0 0.0
    %153 = vmatpush1.xpose.msra.mxu0 %v105
    %154 = vmatprep.subr.mxu0 0.0
    %155 = vmatpush1.xpose.msra.mxu0 %v102
    %156 = vmatprep.subr.mxu0 0.0
    %157 = vmatpush1.xpose.msra.mxu0 %v99
    %158 = vmatprep.subr.mxu0 0.0
    %159 = vmatpush1.xpose.msra.mxu0 %v96
    %160 = vmatprep.subr.mxu0 0.0
    %161 = vmatpush1.xpose.msra.mxu0 %v93
    %162 = vmatprep.subr.mxu0 0.0
    %163 = vmatpush1.xpose.msra.mxu0 %v90
    %164 = vmatprep.subr.mxu0 0.0
    %165 = vmatpush1.xpose.msra.mxu0 %v87
    %166 = vmatprep.subr.mxu0 0.0
    %167 = vmatpush2.xpose.msra.mxu0 0.0
    %168 = vmatprep.subr.mxu0 0.0
    %169 = vmatpush2.xpose.msra.mxu0 0.0
    %170 = vmatprep.subr.mxu0 0.0
    %171 = vmatpush2.xpose.msra.mxu0 0.0
    %172 = vmatprep.subr.mxu0 0.0
    %173 = vmatpush2.xpose.msra.mxu0 0.0
    %174 = vmatprep.subr.mxu0 0.0
    %175 = vmatpush2.xpose.msra.mxu0 0.0
    %176 = vmatprep.subr.mxu0 0.0
    %177 = vmatpush2.xpose.msra.mxu0 0.0
    %178 = vmatprep.subr.mxu0 0.0
    %179 = vmatpush2.xpose.msra.mxu0 0.0
    %180 = vmatprep.subr.mxu0 0.0
    %181 = vmatpush2.xpose.msra.mxu0 0.0
    %182 = vmatprep.subr.mxu0 0.0
    %183 = vmatpush2.xpose.msra.mxu0 0.0
    %184 = vmatprep.subr.mxu0 0.0
    %185 = vmatpush2.xpose.msra.mxu0 0.0
    %186 = vmatprep.subr.mxu0 0.0
    %187 = vmatpush2.xpose.msra.mxu0 0.0
    %188 = vmatprep.subr.mxu0 0.0
    %189 = vmatpush2.xpose.msra.mxu0 0.0
    %190 = vmatprep.subr.mxu0 0.0
    %191 = vmatpush2.xpose.msra.mxu0 0.0
    %192 = vmatprep.subr.mxu0 0.0
    %193 = vmatpush2.xpose.msra.mxu0 0.0
    %194 = vmatprep.subr.mxu0 0.0
    %195 = vmatpush2.xpose.msra.mxu0 0.0
    %196 = vmatprep.subr.mxu0 0.0
    %197 = vmatpush2.xpose.msra.mxu0 0.0
    %198 = vmatprep.mubr.f32.mxu0 0.0
    %199 = vmatmul.mubr.f32.gmra.mxu0 %v75
    %v200 = vpop.f32.mrf.mxu0
    %v201 = vadd.f32 %v56, %v200
    %v202 = vpop.f32.mrf.mxu0
    %203 = vmatprep.mubr.f32.mxu0 0.0
    %204 = vmatmul.mubr.f32.gmra.mxu0 %v78
    %v205 = vpop.f32.mrf.mxu0
    %v206 = vadd.f32 %v61, %v205
    %v207 = vpop.f32.mrf.mxu0
    %208 = vmatprep.mubr.f32.mxu0 0.0
    %209 = vmatmul.mubr.f32.gmra.mxu0 %v81
    %v210 = vpop.f32.mrf.mxu0
    %v211 = vadd.f32 %v66, %v210
    %v212 = vpop.f32.mrf.mxu0
    %213 = vmatprep.mubr.f32.mxu0 0.0
    %214 = vmatmul.mubr.f32.gmra.mxu0 %v84
    %v215 = vpop.f32.mrf.mxu0
    %v216 = vadd.f32 %v71, %v215
    %v217 = vpop.f32.mrf.mxu0
    %218 = vdwg.mxu0
    %v219 = vmax.f32 %v201, 0.0
    %v220 = vmax.f32 %v206, 0.0
    %v221 = vmax.f32 %v211, 0.0
    %v222 = vmax.f32 %v216, 0.0
    %v223 = vld [vmem:[%s3] sm:$0xff]
    %v224 = vld [vmem:[%s3 + $0x8] sm:$0xff]
    %v225 = vld [vmem:[%s4] sm:$0xff]
    %v226 = vld [vmem:[%s4 + $0x8] sm:$0xff]
    %228 = vset.pattern.permute.xlu0 0
    %229 = vperm.xlu0 %228, %v225
    %v230 = vpop.permute.xlu0 %229
    %233 = vset.pattern.permute.xlu0 0
    %234 = vperm.xlu0 %233, %v226
    %v235 = vpop.permute.xlu0 %234
    %vm237 = vcmask 261120
    %v239 = vsel %vm237, %v223, 0
    %v242 = vsel %vm237, %v224, 0
    %244 = vmatprep.subr.mxu0 0.0
    %245 = vmatpush1.msra.mxu0 0.0
    %246 = vmatprep.subr.mxu0 0.0
    %247 = vmatpush1.msra.mxu0 0.0
    %248 = vmatprep.subr.mxu0 0.0
    %249 = vmatpush1.msra.mxu0 0.0
    %250 = vmatprep.subr.mxu0 0.0
    %251 = vmatpush1.msra.mxu0 0.0
    %252 = vmatprep.subr.mxu0 0.0
    %253 = vmatpush1.msra.mxu0 0.0
    %254 = vmatprep.subr.mxu0 0.0
    %255 = vmatpush1.msra.mxu0 0.0
    %256 = vmatprep.subr.mxu0 0.0
    %257 = vmatpush1.msra.mxu0 0.0
    %258 = vmatprep.subr.mxu0 0.0
    %259 = vmatpush1.msra.mxu0 0.0
    %260 = vmatprep.subr.mxu0 0.0
    %261 = vmatpush1.msra.mxu0 0.0
    %262 = vmatprep.subr.mxu0 0.0
    %263 = vmatpush1.msra.mxu0 0.0
    %264 = vmatprep.subr.mxu0 0.0
    %265 = vmatpush1.msra.mxu0 0.0
    %266 = vmatprep.subr.mxu0 0.0
    %267 = vmatpush1.msra.mxu0 0.0
    %268 = vmatprep.subr.mxu0 0.0
    %269 = vmatpush1.msra.mxu0 %v222
    %270 = vmatprep.subr.mxu0 0.0
    %271 = vmatpush1.msra.mxu0 %v221
    %272 = vmatprep.subr.mxu0 0.0
    %273 = vmatpush1.msra.mxu0 %v220
    %274 = vmatprep.subr.mxu0 0.0
    %275 = vmatpush1.msra.mxu0 %v219
    %276 = vmatprep.subr.mxu0 0.0
    %277 = vmatpush2.msra.mxu0 0.0
    %278 = vmatprep.subr.mxu0 0.0
    %279 = vmatpush2.msra.mxu0 0.0
    %280 = vmatprep.subr.mxu0 0.0
    %281 = vmatpush2.msra.mxu0 0.0
    %282 = vmatprep.subr.mxu0 0.0
    %283 = vmatpush2.msra.mxu0 0.0
    %284 = vmatprep.subr.mxu0 0.0
    %285 = vmatpush2.msra.mxu0 0.0
    %286 = vmatprep.subr.mxu0 0.0
    %287 = vmatpush2.msra.mxu0 0.0
    %288 = vmatprep.subr.mxu0 0.0
    %289 = vmatpush2.msra.mxu0 0.0
    %290 = vmatprep.subr.mxu0 0.0
    %291 = vmatpush2.msra.mxu0 0.0
    %292 = vmatprep.subr.mxu0 0.0
    %293 = vmatpush2.msra.mxu0 0.0
    %294 = vmatprep.subr.mxu0 0.0
    %295 = vmatpush2.msra.mxu0 0.0
    %296 = vmatprep.subr.mxu0 0.0
    %297 = vmatpush2.msra.mxu0 0.0
    %298 = vmatprep.subr.mxu0 0.0
    %299 = vmatpush2.msra.mxu0 0.0
    %300 = vmatprep.subr.mxu0 0.0
    %301 = vmatpush2.msra.mxu0 0.0
    %302 = vmatprep.subr.mxu0 0.0
    %303 = vmatpush2.msra.mxu0 0.0
    %304 = vmatprep.subr.mxu0 0.0
    %305 = vmatpush2.msra.mxu0 0.0
    %306 = vmatprep.subr.mxu0 0.0
    %307 = vmatpush2.msra.mxu0 0.0
    %308 = vmatprep.mubr.f32.mxu0 0.0
    %309 = vmatmul.mubr.f32.gmra.mxu0 %v239
    %v310 = vpop.f32.mrf.mxu0
    %v311 = vadd.f32 %v230, %v310
    %v312 = vpop.f32.mrf.mxu0
    %313 = vmatprep.mubr.f32.mxu0 0.0
    %314 = vmatmul.mubr.f32.gmra.mxu0 %v242
    %v315 = vpop.f32.mrf.mxu0
    %v316 = vadd.f32 %v235, %v315
    %v317 = vpop.f32.mrf.mxu0
    %318 = vdwg.mxu0
    %v319 = vmax.f32 %v311, 0.0
    %v320 = vmax.f32 %v316, 0.0
    %v321 = vld [vmem:[%s5] sm:$0x1]
    %v322 = vld [vmem:[#allocation2] sm:$0x1]
    %324 = vset.pattern.permute.xlu0 0
    %325 = vperm.xlu0 %324, %v322
    %v326 = vpop.permute.xlu0 %325
    %v328 = vlaneseq
    %v329 = vshrl.u32 %v328, 7
    %v330 = vsub.s32 0, %v329
    %v331 = vrot.slane %v326, %v330
    %v333 = vsel %vm73, %v321, 0
    %335 = vmatprep.subr.mxu0 0.0
    %336 = vmatpush1.msra.mxu0 0.0
    %337 = vmatprep.subr.mxu0 0.0
    %338 = vmatpush1.msra.mxu0 0.0
    %339 = vmatprep.subr.mxu0 0.0
    %340 = vmatpush1.msra.mxu0 0.0
    %341 = vmatprep.subr.mxu0 0.0
    %342 = vmatpush1.msra.mxu0 0.0
    %343 = vmatprep.subr.mxu0 0.0
    %344 = vmatpush1.msra.mxu0 0.0
    %345 = vmatprep.subr.mxu0 0.0
    %346 = vmatpush1.msra.mxu0 0.0
    %347 = vmatprep.subr.mxu0 0.0
    %348 = vmatpush1.msra.mxu0 0.0
    %349 = vmatprep.subr.mxu0 0.0
    %350 = vmatpush1.msra.mxu0 0.0
    %351 = vmatprep.subr.mxu0 0.0
    %352 = vmatpush1.msra.mxu0 0.0
    %353 = vmatprep.subr.mxu0 0.0
    %354 = vmatpush1.msra.mxu0 0.0
    %355 = vmatprep.subr.mxu0 0.0
    %356 = vmatpush1.msra.mxu0 0.0
    %357 = vmatprep.subr.mxu0 0.0
    %358 = vmatpush1.msra.mxu0 0.0
    %359 = vmatprep.subr.mxu0 0.0
    %360 = vmatpush1.msra.mxu0 0.0
    %361 = vmatprep.subr.mxu0 0.0
    %362 = vmatpush1.msra.mxu0 0.0
    %363 = vmatprep.subr.mxu0 0.0
    %364 = vmatpush1.msra.mxu0 %v320
    %365 = vmatprep.subr.mxu0 0.0
    %366 = vmatpush1.msra.mxu0 %v319
    %367 = vmatprep.subr.mxu0 0.0
    %368 = vmatpush2.msra.mxu0 0.0
    %369 = vmatprep.subr.mxu0 0.0
    %370 = vmatpush2.msra.mxu0 0.0
    %371 = vmatprep.subr.mxu0 0.0
    %372 = vmatpush2.msra.mxu0 0.0
    %373 = vmatprep.subr.mxu0 0.0
    %374 = vmatpush2.msra.mxu0 0.0
    %375 = vmatprep.subr.mxu0 0.0
    %376 = vmatpush2.msra.mxu0 0.0
    %377 = vmatprep.subr.mxu0 0.0
    %378 = vmatpush2.msra.mxu0 0.0
    %379 = vmatprep.subr.mxu0 0.0
    %380 = vmatpush2.msra.mxu0 0.0
    %381 = vmatprep.subr.mxu0 0.0
    %382 = vmatpush2.msra.mxu0 0.0
    %383 = vmatprep.subr.mxu0 0.0
    %384 = vmatpush2.msra.mxu0 0.0
    %385 = vmatprep.subr.mxu0 0.0
    %386 = vmatpush2.msra.mxu0 0.0
    %387 = vmatprep.subr.mxu0 0.0
    %388 = vmatpush2.msra.mxu0 0.0
    %389 = vmatprep.subr.mxu0 0.0
    %390 = vmatpush2.msra.mxu0 0.0
    %391 = vmatprep.subr.mxu0 0.0
    %392 = vmatpush2.msra.mxu0 0.0
    %393 = vmatprep.subr.mxu0 0.0
    %394 = vmatpush2.msra.mxu0 0.0
    %395 = vmatprep.subr.mxu0 0.0
    %396 = vmatpush2.msra.mxu0 0.0
    %397 = vmatprep.subr.mxu0 0.0
    %398 = vmatpush2.msra.mxu0 0.0
    %399 = vmatprep.mubr.f32.mxu0 0.0
    %400 = vmatmul.mubr.f32.gmra.mxu0 %v333
    %v401 = vpop.f32.mrf.mxu0
    %v402 = vadd.f32 %v331, %v401
    %v403 = vpop.f32.mrf.mxu0
    %404 = vdwg.mxu0
    %v405 = vmax.f32 %v402, 0.0
    %406 = vst [vmem:[#allocation3] sm:$0x1] %v405
    // Predicated region
    $region30: #{tpu_custom_call.1} parent=1 // pred_check
      _
    $region31: #{tpu_custom_call.1} parent=1 // pred_check_branch
      %408 = sbr.rel (0) target = $region33
    $region32: #{tpu_custom_call.1} parent=1 // pred_region
      %s410 = ssub.s32 16, 16
      %411 = vsyncadd [#allocation4], %s410
      %s413 = sshll.u32 [#allocation3], 4
      %s414 = int_to_ptr.vmem [resolvable:$true] %s413
      %416 = dma.vmem_to_hbm [thread:$0]  %s414, 16, %s7, [#allocation4]
    $region33: #{tpu_custom_call.1} parent=1 // pred_fallthru
      _
    // Predicated region
    $region34: #{tpu_custom_call.1} parent=1 // pred_check
      _
    $region35: #{tpu_custom_call.1} parent=1 // pred_check_branch
      %418 = sbr.rel (0) target = $region37
    $region36: #{tpu_custom_call.1} parent=1 // pred_region
      %419 = dma.done [#allocation4], 16
    $region37: #{tpu_custom_call.1} parent=1 // pred_fallthru
      _
    %420 = vsyncpa [#allocation4], 1

</llo_original>
